<compile_context>
chip_gen: v5e
topology: v5e:2x2
jax: 0.10.0
libtpu: 0.0.40
codegen_flags: <defaults>
</compile_context>

<pallas_src>
import jax
import jax.numpy as jnp
from jax import lax
from jax.experimental import pallas as pl
from jax.experimental.pallas import tpu as pltpu


def _round_up(v, m):
    return (v + m - 1) // m * m


def _residual_kernel(x_ref, xb_ref, wb_ref, out_ref, adj_ref):
    # x_ref:   (1, TM, Hp)  f32  — current sequence tile (exact residual operand)
    # xb_ref:  (1, Sp, Hp)  bf16 — full per-batch x, resident across S-tiles
    # wb_ref:  (Hp, Hp)     bf16 — shared weight of the synthetic fn, resident
    # out_ref: (1, TM, Hp)  -> att + x
    # adj_ref: (1, TM, Sp)  -> adj tile (lane-dense, full Sp in the lane dim)
    x_tile = x_ref[0]                              # (TM, Hp) f32
    lhs = x_tile.astype(jnp.bfloat16)              # bf16 MXU operand
    xb_full = xb_ref[0]                            # (Sp, Hp) bf16
    wb = wb_ref[...]                               # (Hp, Hp) bf16

    # fn(x): att = x @ W  (MXU, bf16 in / f32 accumulate)
    att = jnp.dot(lhs, wb, preferred_element_type=jnp.float32)        # (TM, Hp)

    # adj = x_tile @ x_full^T  — contract last axes of both operands,
    # no explicit transpose (avoids XLU vxpose + VMEM copy of x).
    adj = lax.dot_general(
        lhs, xb_full,
        dimension_numbers=(((1,), (1,)), ((), ())),
        preferred_element_type=jnp.float32)                           # (TM, Sp)

    # Residual.forward: (att + x, adj) — elementwise add stays in exact f32.
    out_ref[0] = (att + x_tile).astype(out_ref.dtype)
    adj_ref[0] = adj.astype(adj_ref.dtype)


def residual_forward(x, w, *, tile_m=128):
    """Residual(fn) with fn(x) = (x @ w, x @ x^T), fused with the residual add.

    x: (B, S, H) float32
    w: (H, H)    float32
    returns (att + x, adj) with shapes (B, S, H), (B, S, S)

    tile_m: sequence-tile size (multiple of 8; 128 default — halve again on v7x
            for very large S/H if the VMEM estimate below approaches 32 MiB).
    """
    B, S, H = x.shape
    TM = tile_m
    Hp = _round_up(H, 128)           # lane-dense hidden dim
    Sp = _round_up(S, TM)            # sequence padded to a whole number of tiles

    # Pad to lane/sublane friendly shapes (zeros do not perturb the valid region).
    if Sp != S or Hp != H:
        x_pad = jnp.pad(x, ((0, 0), (0, Sp - S), (0, Hp - H)))
    else:
        x_pad = x
    w_pad = jnp.pad(w, ((0, Hp - H), (0, Hp - H))) if Hp != H else w

    xb = x_pad.astype(jnp.bfloat16)  # bf16 copy for the MXU RHS of adj
    wb = w_pad.astype(jnp.bfloat16)  # bf16 weight

    n_m = Sp // TM
    grid = (B, n_m)

    # Advisory cost estimate for XLA's scheduler (padded = actual work done).
    flops = 2 * B * Sp * Hp * Hp + 2 * B * Sp * Sp * Hp
    bytes_accessed = (x_pad.size * 4 + xb.size * 2 + wb.size * 2
                      + B * Sp * Hp * 4 + B * Sp * Sp * 4)

    # Double-buffered VMEM footprint per grid step; give headroom, cap at
    # v7x's 64 MiB physical VMEM.
    vmem_bytes = 2 * (TM * Hp * 4      # f32 x tile
                      + Sp * Hp * 2    # bf16 full x (resident)
                      + Hp * Hp * 2    # bf16 w (resident)
                      + TM * Hp * 4    # out tile
                      + TM * Sp * 4)   # adj tile
    vmem_limit = int(min(max(2 * vmem_bytes, 16 * 1024 * 1024), 64 * 1024 * 1024))

    out_pad, adj_pad = pl.pallas_call(
        _residual_kernel,
        out_shape=(
            jax.ShapeDtypeStruct((B, Sp, Hp), x.dtype),
            jax.ShapeDtypeStruct((B, Sp, Sp), x.dtype),
        ),
        grid_spec=pltpu.PrefetchScalarGridSpec(
            num_scalar_prefetch=0,
            grid=grid,
            in_specs=[
                # f32 x row-tile for the exact residual add (and bf16 LHS via cast)
                pl.BlockSpec((1, TM, Hp), lambda b, m: (b, m, 0)),
                # bf16 full per-batch x: index depends only on b -> stays resident
                # in VMEM across all S-tiles of the same batch element
                pl.BlockSpec((1, Sp, Hp), lambda b, m: (b, 0, 0)),
                # bf16 weight: shared, resident across the whole grid
                pl.BlockSpec((Hp, Hp), lambda b, m: (0, 0)),
            ],
            out_specs=[
                pl.BlockSpec((1, TM, Hp), lambda b, m: (b, m, 0)),
                pl.BlockSpec((1, TM, Sp), lambda b, m: (b, m, 0)),
            ],
        ),
        compiler_params=pltpu.CompilerParams(
            dimension_semantics=("parallel", "parallel"),
            vmem_limit_bytes=vmem_limit,
        ),
        cost_estimate=pl.CostEstimate(
            flops=flops, transcendentals=0, bytes_accessed=bytes_accessed),
    )(x_pad, xb, wb)

    # Strip padding back to the caller-visible shapes.
    return out_pad[:, :S, :H], adj_pad[:, :S, :S]


if __name__ == "__main__":
    B, S, H = 2, 8, 32

    key = jax.random.PRNGKey(0)
    kx, kw = jax.random.split(key)
    x = jax.random.normal(kx, (B, S, H), dtype=jnp.float32)
    # Deterministic synthetic parameter for the wrapped fn (linear map H -> H).
    w = 0.02 * jax.random.normal(kw, (H, H), dtype=jnp.float32)

    out, adj = residual_forward(x, w)
    out = jax.block_until_ready(out)
    adj = jax.block_until_ready(adj)

    # Pure-JAX reference of Residual(fn).forward using the same bf16-operand /
    # f32-accumulate quantization as the kernel's MXU path; the residual add
    # itself is exact f32 in both.
    xb = x.astype(jnp.bfloat16).astype(jnp.float32)
    wb = w.astype(jnp.bfloat16).astype(jnp.float32)
    att_ref = jnp.einsum("bsh,hk->bsk", xb, wb)
    adj_ref = jnp.einsum("bsh,bth->bst", xb, xb)
    out_ref = att_ref + x

    assert jnp.allclose(out, out_ref, atol=1e-4, rtol=1e-4), "residual output mismatch"
    assert jnp.allclose(adj, adj_ref, atol=1e-4, rtol=1e-4), "adj output mismatch"

    print("KERNEL_OK")
</pallas_src>

<mosaic_0001>
module attributes {stable_mosaic.version = 11 : i64} {
  func.func @_residual_kernel(%arg0: i32, %arg1: i32, %arg2: memref<1x128x128xf32, #tpu.memory_space<vmem>>, %arg3: memref<1x128x128xbf16, #tpu.memory_space<vmem>>, %arg4: memref<128x128xbf16, #tpu.memory_space<vmem>>, %arg5: memref<1x128x128xf32, #tpu.memory_space<vmem>>, %arg6: memref<1x128x128xf32, #tpu.memory_space<vmem>>) attributes {dimension_semantics = [#tpu.dimension_semantics<parallel>, #tpu.dimension_semantics<parallel>], iteration_bounds = array<i64: 2, 1>, scalar_prefetch = 0 : i64, scratch_operands = 0 : i64, tpu.core_type = #tpu.core_type<tc>, window_params = [{transform_indices = @transform_0, window_bounds = array<i64: 1, 128, 128>}, {transform_indices = @transform_1, window_bounds = array<i64: 1, 128, 128>}, {pipeline_mode = #tpu.pipeline_mode<synchronous>, transform_indices = @transform_2, window_bounds = array<i64: 128, 128>}, {transform_indices = @transform_3, window_bounds = array<i64: 1, 128, 128>}, {transform_indices = @transform_4, window_bounds = array<i64: 1, 128, 128>}]} {
    %c0 = arith.constant 0 : index
    %c0_0 = arith.constant 0 : index
    %c0_1 = arith.constant 0 : index
    %0 = vector.load %arg2[%c0, %c0_0, %c0_1] : memref<1x128x128xf32, #tpu.memory_space<vmem>>, vector<1x128x128xf32>
    %1 = vector.shape_cast %0 : vector<1x128x128xf32> to vector<128x128xf32>
    %2 = arith.truncf %1 : vector<128x128xf32> to vector<128x128xbf16>
    %c0_2 = arith.constant 0 : index
    %c0_3 = arith.constant 0 : index
    %c0_4 = arith.constant 0 : index
    %3 = vector.load %arg3[%c0_2, %c0_3, %c0_4] : memref<1x128x128xbf16, #tpu.memory_space<vmem>>, vector<1x128x128xbf16>
    %4 = vector.shape_cast %3 : vector<1x128x128xbf16> to vector<128x128xbf16>
    %c0_5 = arith.constant 0 : index
    %c0_6 = arith.constant 0 : index
    %5 = vector.load %arg4[%c0_5, %c0_6] : memref<128x128xbf16, #tpu.memory_space<vmem>>, vector<128x128xbf16>
    %cst = arith.constant dense<0.000000e+00> : vector<128x128xf32>
    %6 = tpu.matmul %2, %5, %cst {dimension_numbers = #tpu.dot_dimension_numbers<[1], [0], [0], [1], [0, 0, 1, 1], [], []>} : vector<128x128xbf16>, vector<128x128xbf16>, vector<128x128xf32> -> vector<128x128xf32>
    %cst_7 = arith.constant dense<0.000000e+00> : vector<128x128xf32>
    %7 = tpu.matmul %2, %4, %cst_7 {dimension_numbers = #tpu.dot_dimension_numbers<[1], [1], [0], [0], [0, 0, 1, 0], [], []>} : vector<128x128xbf16>, vector<128x128xbf16>, vector<128x128xf32> -> vector<128x128xf32>
    %8 = arith.addf %6, %1 : vector<128x128xf32>
    %c0_8 = arith.constant 0 : index
    %c0_9 = arith.constant 0 : index
    %c0_10 = arith.constant 0 : index
    %9 = vector.load %arg5[%c0_8, %c0_9, %c0_10] : memref<1x128x128xf32, #tpu.memory_space<vmem>>, vector<1x128x128xf32>
    %10 = vector.shape_cast %9 : vector<1x128x128xf32> to vector<128x128xf32>
    %11 = vector.shape_cast %8 : vector<128x128xf32> to vector<1x128x128xf32>
    tpu.vector_store %arg5[%c0_8, %c0_9, %c0_10], %11 {strides = array<i32>} : memref<1x128x128xf32, #tpu.memory_space<vmem>>, vector<1x128x128xf32>,
    %c0_11 = arith.constant 0 : index
    %c0_12 = arith.constant 0 : index
    %c0_13 = arith.constant 0 : index
    %12 = vector.load %arg6[%c0_11, %c0_12, %c0_13] : memref<1x128x128xf32, #tpu.memory_space<vmem>>, vector<1x128x128xf32>
    %13 = vector.shape_cast %12 : vector<1x128x128xf32> to vector<128x128xf32>
    %14 = vector.shape_cast %7 : vector<128x128xf32> to vector<1x128x128xf32>
    tpu.vector_store %arg6[%c0_11, %c0_12, %c0_13], %14 {strides = array<i32>} : memref<1x128x128xf32, #tpu.memory_space<vmem>>, vector<1x128x128xf32>,
    return
  }
  func.func @transform_0(%arg0: i32, %arg1: i32) -> (i32, i32, i32) {
    %c0_i32 = arith.constant 0 : i32
    %c0_i32_0 = arith.constant 0 : i32
    return %arg0, %arg1, %c0_i32 : i32, i32, i32
  }
  func.func @transform_1(%arg0: i32, %arg1: i32) -> (i32, i32, i32) {
    %c0_i32 = arith.constant 0 : i32
    %c0_i32_0 = arith.constant 0 : i32
    %c0_i32_1 = arith.constant 0 : i32
    return %arg0, %c0_i32, %c0_i32_0 : i32, i32, i32
  }
  func.func @transform_2(%arg0: i32, %arg1: i32) -> (i32, i32) {
    %c0_i32 = arith.constant 0 : i32
    %c0_i32_0 = arith.constant 0 : i32
    %c0_i32_1 = arith.constant 0 : i32
    return %c0_i32, %c0_i32_0 : i32, i32
  }
  func.func @transform_3(%arg0: i32, %arg1: i32) -> (i32, i32, i32) {
    %c0_i32 = arith.constant 0 : i32
    %c0_i32_0 = arith.constant 0 : i32
    return %arg0, %arg1, %c0_i32 : i32, i32, i32
  }
  func.func @transform_4(%arg0: i32, %arg1: i32) -> (i32, i32, i32) {
    %c0_i32 = arith.constant 0 : i32
    %c0_i32_0 = arith.constant 0 : i32
    return %arg0, %arg1, %c0_i32 : i32, i32, i32
  }
}

</mosaic_0001>

<llo_original>
// kernel: tpu_custom_call.1
$region0: #{tpu_custom_call.1}
  #allocation0 [shape = 'u32[]', space=smem, size = 0x4, offset = 0x4, fixed_abs, tag = 'smem constant byte address 0x4 - core index']
  #allocation1 [shape = 'u32[72,128]{1,0:T(1,128)}', space=vmem, size = 0x9000, scoped, tag = 'internal scratch']
  %s0 = inlined_call_operand.hbm [shape: f32[2,128,128], index: 0, kind: input, shape index: {}]
  %s1 = inlined_call_operand.hbm [shape: bf16[2,128,128], index: 1, kind: input, shape index: {}]
  %s2 = inlined_call_operand.hbm [shape: bf16[128,128], index: 2, kind: input, shape index: {}]
  %s3 = inlined_call_operand.hbm [shape: f32[2,128,128], index: 3, kind: output, shape index: {0}]
  %s4 = inlined_call_operand.hbm [shape: f32[2,128,128], index: 4, kind: output, shape index: {1}]
  %5 = xla_tuple %s3, %s4
  %s6 = sld [smem:[#allocation0]]
  $region65: #{tpu_custom_call.1} parent=0
    _
  %s8 = ssub.s32 1, %s6
  %s9 = scalar_select 0, %s8, %s6
  $region1: #{tpu_custom_call.1} parent=0
    #allocation2 [shape = 'u8[131072]{0}', space=vmem, size = 0x20000, scoped, tag = 'input window, operand 0']
    #allocation3 [shape = 's32[2]{0}', space=sflag, size = 0x8, scoped, tag = 'scoped memory for tpu_custom_call.1']
    #allocation4 [shape = 's32[2]{0}', space=sflag, size = 0x8, scoped, tag = 'scoped memory for tpu_custom_call.1']
    #allocation5 [shape = 'u8[65536]{0}', space=vmem, size = 0x10000, scoped, tag = 'input window, operand 1']
    #allocation6 [shape = 's32[2]{0}', space=sflag, size = 0x8, scoped, tag = 'scoped memory for tpu_custom_call.1']
    #allocation7 [shape = 'u8[32768]{0}', space=vmem, size = 0x8000, scoped, tag = 'input window, operand 2, single buffered']
    #allocation8 [shape = 'u8[131072]{0}', space=vmem, size = 0x20000, scoped, tag = 'output window, operand 0']
    #allocation9 [shape = 'u8[131072]{0}', space=vmem, size = 0x20000, scoped, tag = 'output window, operand 1']
    #allocation10 [shape = 's32[2]{0}', space=sflag, size = 0x8, scoped, tag = 'scoped memory for tpu_custom_call.1']
    %10 = vsyncpa [#allocation3], 0
    %s11 = scalar_lea.sflag [#allocation3], 1
    %12 = vsyncpa %s11, 0
    %13 = vsyncpa [#allocation6], 0
    %s14 = scalar_lea.sflag [#allocation6], 1
    %15 = vsyncpa %s14, 0
    %16 = vsyncpa [#allocation4], 0
    %s17 = scalar_lea.sflag [#allocation4], 1
    %18 = vsyncpa %s17, 0
    %19 = vsyncpa [#allocation10], 0
    %s20 = scalar_lea.sflag [#allocation10], 1
    %21 = vsyncpa %s20, 0
    loop: start=0, step=1, limit=4
    $region2: #{tpu_custom_call.1} parent=1 // loop_pre_header
      _
    $region3: #{tpu_custom_call.1} parent=1 // loop_header
      %s23 = sphi 0, %s27
      %p24 = scmp.ge.s32.totalorder %s23, 4
      %s30 = sphi 0, %s42
      %s31 = sphi 0, %s38
      %s32 = sphi 0, %s30
      %s33 = sphi 0, %s31
      %s34 = sphi 0, %s32
      %s35 = sphi 0, %s33
      %s47 = sphi 0, %s49
      %s50 = sphi 0, %s47
      %s51 = sphi 0, %s50
      %s67 = sphi 0, %s51
      %s73 = sphi 0, %s75
      %s76 = sphi 0, %s73
      %s77 = sphi 0, %s76
      %s93 = sphi 0, %s77
      %s97 = sphi 0, %s97
      %s99 = sphi 0, %s97
      %s100 = sphi 0, %s99
      %s114 = sphi 0, %s100
      %s122 = sphi 0, %s124
      %s125 = sphi 0, %s122
      %s126 = sphi 0, %s125
      %s142 = sphi 0, %s126
      %s150 = sphi 0, %s152
      %s153 = sphi 0, %s150
      %s154 = sphi 0, %s153
      %s170 = sphi 0, %s154
    $region4: #{tpu_custom_call.1} parent=1 // loop_header_branch
      %26 = sbr.rel (%p24) target = $region8
    $region5: #{tpu_custom_call.1} parent=1 // loop_body
      %s28 = ssub.s32 %s23, 1
      %s29 = ssub.s32 %s23, 2
      %s36 = sadd.s32 1, %s31
      %p37 = scmp.ge.s32.totalorder %s36, 1
      %s38 = scalar_select %p37, 0, %s36
      %s39 = sadd.s32 1, %s30
      %s40 = scalar_select %p37, %s39, %s30
      %p41 = scmp.ge.s32.totalorder %s40, 2
      %s42 = scalar_select %p41, 0, %s40
      %s43 = ssub.s32 %s30, %s42
      %s44 = ssub.s32 %s31, %s38
      %s45 = sor.u32 %s43, %s44
      %p46 = scmp.eq.s32.totalorder %s45, 0
      %s48 = sadd.s32 %s47, 1
      %s49 = scalar_select %p46, %s47, %s48
      %p52 = pneg %p46
      %p53 = scmp.eq.s32.totalorder %s23, 1
      %p54 = por %p52, %p53
      %p55 = scmp.ne.s32.totalorder %s47, %s50
      %p56 = scmp.eq.s32.totalorder %s23, 0
      %p57 = por %p55, %p56
      %p58 = scmp.ne.s32.totalorder %s47, %s50
      %p59 = scmp.eq.s32.totalorder %s28, 1
      %p60 = por %p58, %p59
      %p61 = scmp.ne.s32.totalorder %s50, %s51
      %p62 = scmp.eq.s32.totalorder %s28, 0
      %p63 = por %p61, %p62
      %p64 = scmp.ne.s32.totalorder %s50, %s51
      %p65 = scmp.eq.s32.totalorder %s29, 1
      %p66 = por %p64, %p65
      %p68 = scmp.ne.s32.totalorder %s51, %s67
      %p69 = scmp.eq.s32.totalorder %s29, 0
      %p70 = por %p68, %p69
      %s71 = ssub.s32 %s30, %s42
      %p72 = scmp.eq.s32.totalorder %s71, 0
      %s74 = sadd.s32 %s73, 1
      %s75 = scalar_select %p72, %s73, %s74
      %p78 = pneg %p72
      %p79 = scmp.eq.s32.totalorder %s23, 1
      %p80 = por %p78, %p79
      %p81 = scmp.ne.s32.totalorder %s73, %s76
      %p82 = scmp.eq.s32.totalorder %s23, 0
      %p83 = por %p81, %p82
      %p84 = scmp.ne.s32.totalorder %s73, %s76
      %p85 = scmp.eq.s32.totalorder %s28, 1
      %p86 = por %p84, %p85
      %p87 = scmp.ne.s32.totalorder %s76, %s77
      %p88 = scmp.eq.s32.totalorder %s28, 0
      %p89 = por %p87, %p88
      %p90 = scmp.ne.s32.totalorder %s76, %s77
      %p91 = scmp.eq.s32.totalorder %s29, 1
      %p92 = por %p90, %p91
      %p94 = scmp.ne.s32.totalorder %s77, %s93
      %p95 = scmp.eq.s32.totalorder %s29, 0
      %p96 = por %p94, %p95
      %s98 = sadd.s32 %s97, 1
      %p101 = scmp.eq.s32.totalorder %s23, 1
      %p102 = scmp.ne.s32.totalorder %s97, %s99
      %p103 = scmp.eq.s32.totalorder %s23, 0
      %p104 = por %p102, %p103
      %p105 = scmp.ne.s32.totalorder %s97, %s99
      %p106 = scmp.eq.s32.totalorder %s28, 1
      %p107 = por %p105, %p106
      %p108 = scmp.ne.s32.totalorder %s99, %s100
      %p109 = scmp.eq.s32.totalorder %s28, 0
      %p110 = por %p108, %p109
      %p111 = scmp.ne.s32.totalorder %s99, %s100
      %p112 = scmp.eq.s32.totalorder %s29, 1
      %p113 = por %p111, %p112
      %p115 = scmp.ne.s32.totalorder %s100, %s114
      %p116 = scmp.eq.s32.totalorder %s29, 0
      %p117 = por %p115, %p116
      %s118 = ssub.s32 %s30, %s42
      %s119 = ssub.s32 %s31, %s38
      %s120 = sor.u32 %s118, %s119
      %p121 = scmp.eq.s32.totalorder %s120, 0
      %s123 = sadd.s32 %s122, 1
      %s124 = scalar_select %p121, %s122, %s123
      %p127 = pneg %p121
      %p128 = scmp.eq.s32.totalorder %s23, 1
      %p129 = por %p127, %p128
      %p130 = scmp.ne.s32.totalorder %s122, %s125
      %p131 = scmp.eq.s32.totalorder %s23, 0
      %p132 = por %p130, %p131
      %p133 = scmp.ne.s32.totalorder %s122, %s125
      %p134 = scmp.eq.s32.totalorder %s28, 1
      %p135 = por %p133, %p134
      %p136 = scmp.ne.s32.totalorder %s125, %s126
      %p137 = scmp.eq.s32.totalorder %s28, 0
      %p138 = por %p136, %p137
      %p139 = scmp.ne.s32.totalorder %s125, %s126
      %p140 = scmp.eq.s32.totalorder %s29, 1
      %p141 = por %p139, %p140
      %p143 = scmp.ne.s32.totalorder %s126, %s142
      %p144 = scmp.eq.s32.totalorder %s29, 0
      %p145 = por %p143, %p144
      %s146 = ssub.s32 %s30, %s42
      %s147 = ssub.s32 %s31, %s38
      %s148 = sor.u32 %s146, %s147
      %p149 = scmp.eq.s32.totalorder %s148, 0
      %s151 = sadd.s32 %s150, 1
      %s152 = scalar_select %p149, %s150, %s151
      %p155 = pneg %p149
      %p156 = scmp.eq.s32.totalorder %s23, 1
      %p157 = por %p155, %p156
      %p158 = scmp.ne.s32.totalorder %s150, %s153
      %p159 = scmp.eq.s32.totalorder %s23, 0
      %p160 = por %p158, %p159
      %p161 = scmp.ne.s32.totalorder %s150, %s153
      %p162 = scmp.eq.s32.totalorder %s28, 1
      %p163 = por %p161, %p162
      %p164 = scmp.ne.s32.totalorder %s153, %s154
      %p165 = scmp.eq.s32.totalorder %s28, 0
      %p166 = por %p164, %p165
      %p167 = scmp.ne.s32.totalorder %s153, %s154
      %p168 = scmp.eq.s32.totalorder %s29, 1
      %p169 = por %p167, %p168
      %p171 = scmp.ne.s32.totalorder %s154, %s170
      %p172 = scmp.eq.s32.totalorder %s29, 0
      %p173 = por %p171, %p172
      %p174 = scmp.le.s32.totalorder 1, %s23
      %p175 = scmp.lt.s32.totalorder %s23, 3
      %p176 = pnand %p174, %p175
      %p177 = pneg %p176
      // Predicated region
      $region9: #{tpu_custom_call.1} parent=5 // pred_check
        _
      $region10: #{tpu_custom_call.1} parent=5 // pred_check_branch
        %179 = sbr.rel (%p176) target = $region12
      $region11: #{tpu_custom_call.1} parent=5 // pred_region
        %s180 = ssub.s32 %s23, 1
        // Predicated region
        $region13: #{tpu_custom_call.1} parent=11 // pred_check
          %p181 = pneg %p110
        $region14: #{tpu_custom_call.1} parent=11 // pred_check_branch
          %183 = sbr.rel (%p181) target = $region16
        $region15: #{tpu_custom_call.1} parent=11 // pred_region
          %185 = vsyncadd [#allocation6], 0
          %s186 = sshll.u32 %s2, 4
          %s187 = int_to_ptr.hbm [resolvable:$true] %s186
          %s188 = sshll.u32 [#allocation7], 4
          %s189 = int_to_ptr.vmem [resolvable:$true] %s188
          %194 = dma.hbm_to_vmem [thread:$0]  %s187, 1024, %s189, [#allocation6], 64, 64, 4
        $region16: #{tpu_custom_call.1} parent=11 // pred_fallthru
          _
      $region12: #{tpu_custom_call.1} parent=5 // pred_fallthru
        _
      %p195 = scmp.lt.s32.totalorder %s23, 2
      // Predicated region
      $region17: #{tpu_custom_call.1} parent=5 // pred_check
        %p196 = pneg %p195
      $region18: #{tpu_custom_call.1} parent=5 // pred_check_branch
        %198 = sbr.rel (%p196) target = $region20
      $region19: #{tpu_custom_call.1} parent=5 // pred_region
        // Predicated region
        $region21: #{tpu_custom_call.1} parent=19 // pred_check
          %p199 = pneg %p57
        $region22: #{tpu_custom_call.1} parent=19 // pred_check_branch
          %201 = sbr.rel (%p199) target = $region24
        $region23: #{tpu_custom_call.1} parent=19 // pred_region
          %s202 = sand.u32 %s47, 1
          %s203 = scalar_lea.sflag [#allocation3], %s202
          %s204 = sand.u32 %s47, 1
          %s205 = smul.addr %s204, 128
          %s206 = scalar_lea.vmem [#allocation2], %s205
          %s207 = smul.u32 16, %s31
          %209 = vsyncadd %s203, 0
          %s210 = smul.addr %s30, 16
          %s211 = sadd.s32 %s207, %s210
          %s212 = smul.addr %s211, 8
          %s213 = scalar_lea.hbm %s0, %s212
          %s214 = sshll.u32 %s213, 4
          %s215 = int_to_ptr.hbm [resolvable:$true] %s214
          %s216 = sshll.u32 %s206, 4
          %s217 = int_to_ptr.vmem [resolvable:$true] %s216
          %222 = dma.hbm_to_vmem [thread:$0]  %s215, 2048, %s217, %s203, 128, 128, 8
        $region24: #{tpu_custom_call.1} parent=19 // pred_fallthru
          _
        // Predicated region
        $region25: #{tpu_custom_call.1} parent=19 // pred_check
          %p223 = pneg %p83
        $region26: #{tpu_custom_call.1} parent=19 // pred_check_branch
          %225 = sbr.rel (%p223) target = $region28
        $region27: #{tpu_custom_call.1} parent=19 // pred_region
          %s226 = sand.u32 %s23, 1
          %s227 = scalar_lea.sflag [#allocation6], %s226
          %s228 = sand.u32 %s73, 1
          %s229 = smul.addr %s228, 64
          %s230 = scalar_lea.vmem [#allocation5], %s229
          %232 = vsyncadd %s227, 0
          %s233 = smul.addr %s30, 16
          %s234 = smul.addr %s233, 4
          %s235 = scalar_lea.hbm %s1, %s234
          %s236 = sshll.u32 %s235, 4
          %s237 = int_to_ptr.hbm [resolvable:$true] %s236
          %s238 = sshll.u32 %s230, 4
          %s239 = int_to_ptr.vmem [resolvable:$true] %s238
          %244 = dma.hbm_to_vmem [thread:$0]  %s237, 1024, %s239, %s227, 64, 64, 4
        $region28: #{tpu_custom_call.1} parent=19 // pred_fallthru
          _
      $region20: #{tpu_custom_call.1} parent=5 // pred_fallthru
        _
      %p245 = scmp.le.s32.totalorder 1, %s23
      %p246 = scmp.lt.s32.totalorder %s23, 3
      %p247 = pnand %p245, %p246
      %p248 = pneg %p247
      // Predicated region
      $region29: #{tpu_custom_call.1} parent=5 // pred_check
        _
      $region30: #{tpu_custom_call.1} parent=5 // pred_check_branch
        %250 = sbr.rel (%p247) target = $region32
      $region31: #{tpu_custom_call.1} parent=5 // pred_region
        %s251 = ssub.s32 %s23, 1
        %s252 = sand.u32 %s50, 1
        %s253 = scalar_lea.sflag [#allocation3], %s252
        %s254 = sand.u32 %s50, 1
        %s255 = smul.addr %s254, 128
        %s256 = scalar_lea.vmem [#allocation2], %s255
        // Predicated region
        $region33: #{tpu_custom_call.1} parent=31 // pred_check
          %p257 = pneg %p63
        $region34: #{tpu_custom_call.1} parent=31 // pred_check_branch
          %259 = sbr.rel (%p257) target = $region36
        $region35: #{tpu_custom_call.1} parent=31 // pred_region
          %261 = dma.done %s253, 2048
        $region36: #{tpu_custom_call.1} parent=31 // pred_fallthru
          _
        %s262 = sand.u32 %s28, 1
        %s263 = scalar_lea.sflag [#allocation6], %s262
        %s264 = sand.u32 %s76, 1
        %s265 = smul.addr %s264, 64
        %s266 = scalar_lea.vmem [#allocation5], %s265
        // Predicated region
        $region37: #{tpu_custom_call.1} parent=31 // pred_check
          %p267 = pneg %p89
        $region38: #{tpu_custom_call.1} parent=31 // pred_check_branch
          %269 = sbr.rel (%p267) target = $region40
        $region39: #{tpu_custom_call.1} parent=31 // pred_region
          %271 = dma.done %s263, 1024
        $region40: #{tpu_custom_call.1} parent=31 // pred_fallthru
          _
        // Predicated region
        $region41: #{tpu_custom_call.1} parent=31 // pred_check
          %p272 = pneg %p110
        $region42: #{tpu_custom_call.1} parent=31 // pred_check_branch
          %274 = sbr.rel (%p272) target = $region44
        $region43: #{tpu_custom_call.1} parent=31 // pred_region
          %276 = dma.done [#allocation6], 1024
        $region44: #{tpu_custom_call.1} parent=31 // pred_fallthru
          _
        %s277 = sand.u32 %s50, 1
        %s278 = scalar_lea.sflag [#allocation3], %s277
        %s279 = sand.u32 %s50, 1
        %s280 = smul.addr %s279, 128
        %s281 = scalar_lea.vmem [#allocation2], %s280
        %p282 = pneg %p63
        %p283 = pneg %p60
        %s284 = sand.u32 %s28, 1
        %s285 = scalar_lea.sflag [#allocation6], %s284
        %s286 = sand.u32 %s76, 1
        %s287 = smul.addr %s286, 64
        %s288 = scalar_lea.vmem [#allocation5], %s287
        %p289 = pneg %p89
        %p290 = pneg %p86
        %p291 = pneg %p110
        %p292 = pneg %p107
        %p293 = pneg %p138
        %p294 = pneg %p135
        %s295 = sand.u32 %s125, 1
        %s296 = scalar_lea.sflag [#allocation4], %s295
        %s297 = sand.u32 %s125, 1
        %s298 = smul.addr %s297, 128
        %s299 = scalar_lea.vmem [#allocation8], %s298
        %p300 = pneg %p166
        %p301 = pneg %p163
        %s302 = sand.u32 %s153, 1
        %s303 = scalar_lea.sflag [#allocation10], %s302
        %s304 = sand.u32 %s153, 1
        %s305 = smul.addr %s304, 128
        %s306 = scalar_lea.vmem [#allocation9], %s305
        %s307 = smul.u32 16, %s33
        %s308 = smul.u32 16, %s33
        %s309 = smul.u32 16, %s33
        %v310 = vld [vmem:[%s256] sm:$0xff]
        %v311 = vld [vmem:[%s256 + $0x8] sm:$0xff]
        %v312 = vld [vmem:[%s256 + $0x10] sm:$0xff]
        %v313 = vld [vmem:[%s256 + $0x18] sm:$0xff]
        %v314 = vld [vmem:[%s256 + $0x20] sm:$0xff]
        %v315 = vld [vmem:[%s256 + $0x28] sm:$0xff]
        %v316 = vld [vmem:[%s256 + $0x30] sm:$0xff]
        %v317 = vld [vmem:[%s256 + $0x38] sm:$0xff]
        %v318 = vld [vmem:[%s256 + $0x40] sm:$0xff]
        %v319 = vld [vmem:[%s256 + $0x48] sm:$0xff]
        %v320 = vld [vmem:[%s256 + $0x50] sm:$0xff]
        %v321 = vld [vmem:[%s256 + $0x58] sm:$0xff]
        %v322 = vld [vmem:[%s256 + $0x60] sm:$0xff]
        %v323 = vld [vmem:[%s256 + $0x68] sm:$0xff]
        %v324 = vld [vmem:[%s256 + $0x70] sm:$0xff]
        %v325 = vld [vmem:[%s256 + $0x78] sm:$0xff]
        %v326 = vpack.c.bf16 %v311, %v310
        %v327 = vpack.c.bf16 %v313, %v312
        %v328 = vpack.c.bf16 %v315, %v314
        %v329 = vpack.c.bf16 %v317, %v316
        %v330 = vpack.c.bf16 %v319, %v318
        %v331 = vpack.c.bf16 %v321, %v320
        %v332 = vpack.c.bf16 %v323, %v322
        %v333 = vpack.c.bf16 %v325, %v324
        %v334 = vld [vmem:[%s266] sm:$0xf]
        %v335 = vld [vmem:[%s266 + $0x4] sm:$0xf]
        %v336 = vld [vmem:[%s266 + $0x8] sm:$0xf]
        %v337 = vld [vmem:[%s266 + $0xc] sm:$0xf]
        %v338 = vld [vmem:[%s266 + $0x10] sm:$0xf]
        %v339 = vld [vmem:[%s266 + $0x14] sm:$0xf]
        %v340 = vld [vmem:[%s266 + $0x18] sm:$0xf]
        %v341 = vld [vmem:[%s266 + $0x1c] sm:$0xf]
        %v342 = vld [vmem:[%s266 + $0x20] sm:$0xf]
        %v343 = vld [vmem:[%s266 + $0x24] sm:$0xf]
        %v344 = vld [vmem:[%s266 + $0x28] sm:$0xf]
        %v345 = vld [vmem:[%s266 + $0x2c] sm:$0xf]
        %v346 = vld [vmem:[%s266 + $0x30] sm:$0xf]
        %v347 = vld [vmem:[%s266 + $0x34] sm:$0xf]
        %v348 = vld [vmem:[%s266 + $0x38] sm:$0xf]
        %v349 = vld [vmem:[%s266 + $0x3c] sm:$0xf]
        %v350 = vld [vmem:[#allocation7] sm:$0xf]
        %v351 = vld [vmem:[#allocation7 + $0x4] sm:$0xf]
        %v352 = vld [vmem:[#allocation7 + $0x8] sm:$0xf]
        %v353 = vld [vmem:[#allocation7 + $0xc] sm:$0xf]
        %v354 = vld [vmem:[#allocation7 + $0x10] sm:$0xf]
        %v355 = vld [vmem:[#allocation7 + $0x14] sm:$0xf]
        %v356 = vld [vmem:[#allocation7 + $0x18] sm:$0xf]
        %v357 = vld [vmem:[#allocation7 + $0x1c] sm:$0xf]
        %v358 = vld [vmem:[#allocation7 + $0x20] sm:$0xf]
        %v359 = vld [vmem:[#allocation7 + $0x24] sm:$0xf]
        %v360 = vld [vmem:[#allocation7 + $0x28] sm:$0xf]
        %v361 = vld [vmem:[#allocation7 + $0x2c] sm:$0xf]
        %v362 = vld [vmem:[#allocation7 + $0x30] sm:$0xf]
        %v363 = vld [vmem:[#allocation7 + $0x34] sm:$0xf]
        %v364 = vld [vmem:[#allocation7 + $0x38] sm:$0xf]
        %v365 = vld [vmem:[#allocation7 + $0x3c] sm:$0xf]
        %v382 = vunpack.c.l.b16 %v334
        %v383 = vunpack.c.l.b16 %v335
        %v384 = vunpack.c.l.b16 %v336
        %v385 = vunpack.c.l.b16 %v337
        %v386 = vunpack.c.l.b16 %v338
        %v387 = vunpack.c.l.b16 %v339
        %v388 = vunpack.c.l.b16 %v340
        %v389 = vunpack.c.l.b16 %v341
        %v390 = vunpack.c.l.b16 %v342
        %v391 = vunpack.c.l.b16 %v343
        %v392 = vunpack.c.l.b16 %v344
        %v393 = vunpack.c.l.b16 %v345
        %v394 = vunpack.c.l.b16 %v346
        %v395 = vunpack.c.l.b16 %v347
        %v396 = vunpack.c.l.b16 %v348
        %v397 = vunpack.c.l.b16 %v349
        %v398 = vpack.c.b16 %v383, %v382
        %v399 = vpack.c.b16 %v385, %v384
        %v400 = vpack.c.b16 %v387, %v386
        %v401 = vpack.c.b16 %v389, %v388
        %v402 = vpack.c.b16 %v391, %v390
        %v403 = vpack.c.b16 %v393, %v392
        %v404 = vpack.c.b16 %v395, %v394
        %v405 = vpack.c.b16 %v397, %v396
        %414 = vmatpush.bf16.xpose.msra.mxu0 %v405
        %415 = vmatpush.bf16.xpose.msra.mxu0 %v404
        %416 = vmatpush.bf16.xpose.msra.mxu0 %v403
        %417 = vmatpush.bf16.xpose.msra.mxu0 %v402
        %418 = vmatpush.bf16.xpose.msra.mxu0 %v401
        %419 = vmatpush.bf16.xpose.msra.mxu0 %v400
        %420 = vmatpush.bf16.xpose.msra.mxu0 %v399
        %421 = vmatpush.bf16.xpose.msra.mxu0 %v398
        %422 = vmatmul.bf16.gmra.mxu0 %v326
        %v423 = vpop.f32.mrf.mxu0
        %v424 = vadd.f32 0.0, %v423
        %v425 = vpop.f32.mrf.mxu0
        %v426 = vadd.f32 0.0, %v425
        %427 = vmatmul.bf16.gmra.mxu0 %v327
        %v428 = vpop.f32.mrf.mxu0
        %v429 = vadd.f32 0.0, %v428
        %v430 = vpop.f32.mrf.mxu0
        %v431 = vadd.f32 0.0, %v430
        %432 = vmatmul.bf16.gmra.mxu0 %v328
        %v433 = vpop.f32.mrf.mxu0
        %v434 = vadd.f32 0.0, %v433
        %v435 = vpop.f32.mrf.mxu0
        %v436 = vadd.f32 0.0, %v435
        %437 = vmatmul.bf16.gmra.mxu0 %v329
        %v438 = vpop.f32.mrf.mxu0
        %v439 = vadd.f32 0.0, %v438
        %v440 = vpop.f32.mrf.mxu0
        %v441 = vadd.f32 0.0, %v440
        %442 = vmatmul.bf16.gmra.mxu0 %v330
        %v443 = vpop.f32.mrf.mxu0
        %v444 = vadd.f32 0.0, %v443
        %v445 = vpop.f32.mrf.mxu0
        %v446 = vadd.f32 0.0, %v445
        %447 = vmatmul.bf16.gmra.mxu0 %v331
        %v448 = vpop.f32.mrf.mxu0
        %v449 = vadd.f32 0.0, %v448
        %v450 = vpop.f32.mrf.mxu0
        %v451 = vadd.f32 0.0, %v450
        %452 = vmatmul.bf16.gmra.mxu0 %v332
        %v453 = vpop.f32.mrf.mxu0
        %v454 = vadd.f32 0.0, %v453
        %v455 = vpop.f32.mrf.mxu0
        %v456 = vadd.f32 0.0, %v455
        %457 = vmatmul.bf16.gmra.mxu0 %v333
        %v458 = vpop.f32.mrf.mxu0
        %v459 = vadd.f32 0.0, %v458
        %v460 = vpop.f32.mrf.mxu0
        %v461 = vadd.f32 0.0, %v460
        %462 = vdwg.mxu0
        %v479 = vunpack.c.l.b16 %v350
        %v480 = vunpack.c.l.b16 %v351
        %v481 = vunpack.c.l.b16 %v352
        %v482 = vunpack.c.l.b16 %v353
        %v483 = vunpack.c.l.b16 %v354
        %v484 = vunpack.c.l.b16 %v355
        %v485 = vunpack.c.l.b16 %v356
        %v486 = vunpack.c.l.b16 %v357
        %v487 = vunpack.c.l.b16 %v358
        %v488 = vunpack.c.l.b16 %v359
        %v489 = vunpack.c.l.b16 %v360
        %v490 = vunpack.c.l.b16 %v361
        %v491 = vunpack.c.l.b16 %v362
        %v492 = vunpack.c.l.b16 %v363
        %v493 = vunpack.c.l.b16 %v364
        %v494 = vunpack.c.l.b16 %v365
        %v495 = vpack.c.b16 %v480, %v479
        %v496 = vpack.c.b16 %v482, %v481
        %v497 = vpack.c.b16 %v484, %v483
        %v498 = vpack.c.b16 %v486, %v485
        %v499 = vpack.c.b16 %v488, %v487
        %v500 = vpack.c.b16 %v490, %v489
        %v501 = vpack.c.b16 %v492, %v491
        %v502 = vpack.c.b16 %v494, %v493
        %511 = vmatpush.bf16.msra.mxu0 %v502
        %512 = vmatpush.bf16.msra.mxu0 %v501
        %513 = vmatpush.bf16.msra.mxu0 %v500
        %514 = vmatpush.bf16.msra.mxu0 %v499
        %515 = vmatpush.bf16.msra.mxu0 %v498
        %516 = vmatpush.bf16.msra.mxu0 %v497
        %517 = vmatpush.bf16.msra.mxu0 %v496
        %518 = vmatpush.bf16.msra.mxu0 %v495
        %519 = vmatmul.bf16.gmra.mxu0 %v326
        %v520 = vpop.f32.mrf.mxu0
        %v521 = vadd.f32 %v310, %v520
        %v522 = vpop.f32.mrf.mxu0
        %v523 = vadd.f32 %v311, %v522
        %524 = vmatmul.bf16.gmra.mxu0 %v327
        %v525 = vpop.f32.mrf.mxu0
        %v526 = vadd.f32 %v312, %v525
        %v527 = vpop.f32.mrf.mxu0
        %v528 = vadd.f32 %v313, %v527
        %529 = vmatmul.bf16.gmra.mxu0 %v328
        %v530 = vpop.f32.mrf.mxu0
        %v531 = vadd.f32 %v314, %v530
        %v532 = vpop.f32.mrf.mxu0
        %v533 = vadd.f32 %v315, %v532
        %534 = vmatmul.bf16.gmra.mxu0 %v329
        %v535 = vpop.f32.mrf.mxu0
        %v536 = vadd.f32 %v316, %v535
        %v537 = vpop.f32.mrf.mxu0
        %v538 = vadd.f32 %v317, %v537
        %539 = vmatmul.bf16.gmra.mxu0 %v330
        %v540 = vpop.f32.mrf.mxu0
        %v541 = vadd.f32 %v318, %v540
        %v542 = vpop.f32.mrf.mxu0
        %v543 = vadd.f32 %v319, %v542
        %544 = vmatmul.bf16.gmra.mxu0 %v331
        %v545 = vpop.f32.mrf.mxu0
        %v546 = vadd.f32 %v320, %v545
        %v547 = vpop.f32.mrf.mxu0
        %v548 = vadd.f32 %v321, %v547
        %549 = vmatmul.bf16.gmra.mxu0 %v332
        %v550 = vpop.f32.mrf.mxu0
        %v551 = vadd.f32 %v322, %v550
        %v552 = vpop.f32.mrf.mxu0
        %v553 = vadd.f32 %v323, %v552
        %554 = vmatmul.bf16.gmra.mxu0 %v333
        %v555 = vpop.f32.mrf.mxu0
        %v556 = vadd.f32 %v324, %v555
        %v557 = vpop.f32.mrf.mxu0
        %v558 = vadd.f32 %v325, %v557
        %559 = vdwg.mxu0
        %560 = vst [vmem:[%s299] sm:$0xff] %v521
        %561 = vst [vmem:[%s299 + $0x8] sm:$0xff] %v523
        %562 = vst [vmem:[%s299 + $0x10] sm:$0xff] %v526
        %563 = vst [vmem:[%s299 + $0x18] sm:$0xff] %v528
        %564 = vst [vmem:[%s299 + $0x20] sm:$0xff] %v531
        %565 = vst [vmem:[%s299 + $0x28] sm:$0xff] %v533
        %566 = vst [vmem:[%s299 + $0x30] sm:$0xff] %v536
        %567 = vst [vmem:[%s299 + $0x38] sm:$0xff] %v538
        %568 = vst [vmem:[%s299 + $0x40] sm:$0xff] %v541
        %569 = vst [vmem:[%s299 + $0x48] sm:$0xff] %v543
        %570 = vst [vmem:[%s299 + $0x50] sm:$0xff] %v546
        %571 = vst [vmem:[%s299 + $0x58] sm:$0xff] %v548
        %572 = vst [vmem:[%s299 + $0x60] sm:$0xff] %v551
        %573 = vst [vmem:[%s299 + $0x68] sm:$0xff] %v553
        %574 = vst [vmem:[%s299 + $0x70] sm:$0xff] %v556
        %575 = vst [vmem:[%s299 + $0x78] sm:$0xff] %v558
        %576 = vst [vmem:[%s306] sm:$0xff] %v424
        %577 = vst [vmem:[%s306 + $0x8] sm:$0xff] %v426
        %578 = vst [vmem:[%s306 + $0x10] sm:$0xff] %v429
        %579 = vst [vmem:[%s306 + $0x18] sm:$0xff] %v431
        %580 = vst [vmem:[%s306 + $0x20] sm:$0xff] %v434
        %581 = vst [vmem:[%s306 + $0x28] sm:$0xff] %v436
        %582 = vst [vmem:[%s306 + $0x30] sm:$0xff] %v439
        %583 = vst [vmem:[%s306 + $0x38] sm:$0xff] %v441
        %584 = vst [vmem:[%s306 + $0x40] sm:$0xff] %v444
        %585 = vst [vmem:[%s306 + $0x48] sm:$0xff] %v446
        %586 = vst [vmem:[%s306 + $0x50] sm:$0xff] %v449
        %587 = vst [vmem:[%s306 + $0x58] sm:$0xff] %v451
        %588 = vst [vmem:[%s306 + $0x60] sm:$0xff] %v454
        %589 = vst [vmem:[%s306 + $0x68] sm:$0xff] %v456
        %590 = vst [vmem:[%s306 + $0x70] sm:$0xff] %v459
        %591 = vst [vmem:[%s306 + $0x78] sm:$0xff] %v461
        %s592 = sand.u32 %s125, 1
        %s593 = scalar_lea.sflag [#allocation4], %s592
        %s594 = sand.u32 %s125, 1
        %s595 = smul.addr %s594, 128
        %s596 = scalar_lea.vmem [#allocation8], %s595
        %s597 = sand.u32 %s153, 1
        %s598 = scalar_lea.sflag [#allocation10], %s597
        %s599 = sand.u32 %s153, 1
        %s600 = smul.addr %s599, 128
        %s601 = scalar_lea.vmem [#allocation9], %s600
        // Predicated region
        $region45: #{tpu_custom_call.1} parent=31 // pred_check
          %p602 = pneg %p135
        $region46: #{tpu_custom_call.1} parent=31 // pred_check_branch
          %604 = sbr.rel (%p602) target = $region48
        $region47: #{tpu_custom_call.1} parent=31 // pred_region
          %s605 = smul.u32 16, %s33
          %607 = vsyncadd %s593, 0
          %s608 = smul.addr %s32, 16
          %s609 = sadd.s32 %s605, %s608
          %s610 = smul.addr %s609, 8
          %s611 = scalar_lea.hbm %s3, %s610
          %s612 = sshll.u32 %s596, 4
          %s613 = int_to_ptr.vmem [resolvable:$true] %s612
          %s614 = sshll.u32 %s611, 4
          %s615 = int_to_ptr.hbm [resolvable:$true] %s614
          %620 = dma.vmem_to_hbm [thread:$0]  %s613, 2048, %s615, %s593, 128, 128, 8
        $region48: #{tpu_custom_call.1} parent=31 // pred_fallthru
          _
        // Predicated region
        $region49: #{tpu_custom_call.1} parent=31 // pred_check
          %p621 = pneg %p163
        $region50: #{tpu_custom_call.1} parent=31 // pred_check_branch
          %623 = sbr.rel (%p621) target = $region52
        $region51: #{tpu_custom_call.1} parent=31 // pred_region
          %s624 = smul.u32 16, %s33
          %626 = vsyncadd %s598, 0
          %s627 = smul.addr %s32, 16
          %s628 = sadd.s32 %s624, %s627
          %s629 = smul.addr %s628, 8
          %s630 = scalar_lea.hbm %s4, %s629
          %s631 = sshll.u32 %s601, 4
          %s632 = int_to_ptr.vmem [resolvable:$true] %s631
          %s633 = sshll.u32 %s630, 4
          %s634 = int_to_ptr.hbm [resolvable:$true] %s633
          %639 = dma.vmem_to_hbm [thread:$0]  %s632, 2048, %s634, %s598, 128, 128, 8
        $region52: #{tpu_custom_call.1} parent=31 // pred_fallthru
          _
      $region32: #{tpu_custom_call.1} parent=5 // pred_fallthru
        _
      %p640 = scmp.le.s32.totalorder 2, %s23
      // Predicated region
      $region53: #{tpu_custom_call.1} parent=5 // pred_check
        %p641 = pneg %p640
      $region54: #{tpu_custom_call.1} parent=5 // pred_check_branch
        %643 = sbr.rel (%p641) target = $region56
      $region55: #{tpu_custom_call.1} parent=5 // pred_region
        %s644 = ssub.s32 %s23, 2
        // Predicated region
        $region57: #{tpu_custom_call.1} parent=55 // pred_check
          %p645 = pneg %p141
        $region58: #{tpu_custom_call.1} parent=55 // pred_check_branch
          %647 = sbr.rel (%p645) target = $region60
        $region59: #{tpu_custom_call.1} parent=55 // pred_region
          %s648 = sand.u32 %s126, 1
          %s649 = scalar_lea.sflag [#allocation4], %s648
          %s650 = sand.u32 %s126, 1
          %s651 = smul.addr %s650, 128
          %s652 = scalar_lea.vmem [#allocation8], %s651
          %654 = dma.done %s649, 2048
        $region60: #{tpu_custom_call.1} parent=55 // pred_fallthru
          _
        // Predicated region
        $region61: #{tpu_custom_call.1} parent=55 // pred_check
          %p655 = pneg %p169
        $region62: #{tpu_custom_call.1} parent=55 // pred_check_branch
          %657 = sbr.rel (%p655) target = $region64
        $region63: #{tpu_custom_call.1} parent=55 // pred_region
          %s658 = sand.u32 %s154, 1
          %s659 = scalar_lea.sflag [#allocation10], %s658
          %s660 = sand.u32 %s154, 1
          %s661 = smul.addr %s660, 128
          %s662 = scalar_lea.vmem [#allocation9], %s661
          %664 = dma.done %s659, 2048
        $region64: #{tpu_custom_call.1} parent=55 // pred_fallthru
          _
      $region56: #{tpu_custom_call.1} parent=5 // pred_fallthru
        _
    $region6: #{tpu_custom_call.1} parent=1 // loop_footer
      %s27 = sadd.s32 1, %s23
    $region7: #{tpu_custom_call.1} parent=1 // loop_footer_branch
      %22 = sbr.rel target = $region3
    $region8: #{tpu_custom_call.1} parent=1 // loop_exit
      _
    %665 = vsyncpa [#allocation3], 1
    %s666 = scalar_lea.sflag [#allocation3], 1
    %667 = vsyncpa %s666, 1
    %668 = vsyncpa [#allocation6], 1
    %s669 = scalar_lea.sflag [#allocation6], 1
    %670 = vsyncpa %s669, 1
    %671 = vsyncpa [#allocation4], 1
    %s672 = scalar_lea.sflag [#allocation4], 1
    %673 = vsyncpa %s672, 1
    %674 = vsyncpa [#allocation10], 1
    %s675 = scalar_lea.sflag [#allocation10], 1
    %676 = vsyncpa %s675, 1

</llo_original>
